<compile_context>
chip_gen: v7x
topology: tpu7x:2x2x1
jax: 0.10.0
libtpu: 0.0.40
codegen_flags: <defaults>
</compile_context>

<pallas_src>
import functools

import jax
import jax.numpy as jnp
from jax import lax
from jax.experimental import pallas as pl
from jax.experimental.pallas import tpu as pltpu

_LANE = 128
_SUBLANE = 8
_NEG_INF = -1e30


def _round_up(x, m):
    return ((x + m - 1) // m) * m


def _fused_head_kernel(ids_ref, mask_ref, emb_ref, w_ref, b_ref, o_ref,
                       xbuf, gsem):
    """Fused CLS gather + mask + bf16 matmul + bias + softmax for one batch tile.

    ids_ref : SMEM [Bp] int32 (scalar prefetch)   mask_ref: VMEM [TB, 1] f32
    emb_ref : HBM  [VOCAB, D_in] f32 (pl.ANY)     w_ref   : VMEM [D_in, Dp] bf16
    b_ref   : VMEM [1, Dp] f32                    o_ref   : VMEM [TB, Dp] f32
    xbuf    : VMEM scratch [TB, D_in] f32         gsem    : single DMA semaphore
    """
    tb = xbuf.shape[0]
    base = pl.program_id(0) * tb

    def _row_copy(r, src_row):
        return pltpu.make_async_copy(
            emb_ref.at[pl.ds(src_row, 1)], xbuf.at[pl.ds(r, 1)], gsem)

    # Issue one row-gather DMA per tile row (embedding table stays in HBM).
    def _issue(r, carry):
        _row_copy(r, ids_ref[base + r]).start()
        return carry

    lax.fori_loop(0, tb, _issue, 0)

    # Drain: tb equally-sized copies share one DMA semaphore -> wait tb times.
    def _drain(r, carry):
        _row_copy(r, 0).wait()
        return carry

    lax.fori_loop(0, tb, _drain, 0)

    # Mask multiply + bf16 cast fused here (previously separate XLA passes).
    x = (xbuf[...] * mask_ref[...]).astype(jnp.bfloat16)
    logits = jnp.dot(x, w_ref[...], preferred_element_type=jnp.float32) + b_ref[...]
    # Padded class lanes carry bias == -1e30 (their weight columns are zero),
    # so exp() underflows to 0 and the softmax denominator stays exact.
    m = jnp.max(logits, axis=-1, keepdims=True)
    e = jnp.exp(logits - m)
    denom = jnp.sum(e, axis=-1, keepdims=True)
    o_ref[...] = (e / denom).astype(o_ref.dtype)   # exact division: DMA-bound, free


def make_head_params(weight, bias):
    """One-time constant prep (hoisted out of the per-call path).

    weight: [D_in, D_out] f32, bias: [D_out] f32
    Returns (w_bf [D_in, Dp] bf16, b_pad [1, Dp] f32) with Dp = round_up(D_out, 128).
    Padded weight columns are zero; padded bias lanes are -1e30 (softmax mask).
    """
    d_in, d_out = weight.shape
    dp = _round_up(d_out, _LANE)
    w_pad = jnp.zeros((d_in, dp), jnp.float32).at[:, :d_out].set(
        weight.astype(jnp.float32))
    b_pad = jnp.full((1, dp), _NEG_INF, jnp.float32).at[:, :d_out].set(
        bias.astype(jnp.float32))
    return w_pad.astype(jnp.bfloat16), b_pad


def classifier_head(cls_ids, cls_mask, embed_table, w_bf, b_pad, *,
                    d_out, block_b=1024):
    """softmax(gather(embed_table, cls_ids) * mask @ W + b) -> [B, d_out] f32."""
    B = cls_ids.shape[0]
    vocab, d_in = embed_table.shape
    d_in_w, dp = w_bf.shape
    assert d_in == d_in_w

    # Sublane-aligned batch tile, capped at half the (rounded) batch so both
    # v7x TensorCores get grid steps; 1024 keeps the pipeline deep while the
    # VMEM footprint (~4.5 MiB) stays under the v5e 16 MiB scoped default.
    tb = min(block_b,
             max(_SUBLANE, _round_up(_round_up(B, _SUBLANE) // 2, _SUBLANE)))
    bp = _round_up(B, tb)

    # Only the tiny scalar ids/mask vectors get padded — no [B, D_in] pad copy.
    # Tail rows gather row 0 with mask 0 (finite, discarded by the final slice).
    ids_p = jnp.zeros((bp,), jnp.int32).at[:B].set(cls_ids.astype(jnp.int32))
    mask_p = jnp.zeros((bp, 1), jnp.float32).at[:B, 0].set(
        cls_mask.astype(jnp.float32))

    out = pl.pallas_call(
        _fused_head_kernel,
        out_shape=jax.ShapeDtypeStruct((bp, dp), jnp.float32),
        grid_spec=pltpu.PrefetchScalarGridSpec(
            num_scalar_prefetch=1,
            grid=(bp // tb,),
            in_specs=[
                pl.BlockSpec((tb, 1), lambda i, ids: (i, 0)),     # per-row mask
                pl.BlockSpec(memory_space=pl.ANY),                # embed table (HBM)
                pl.BlockSpec((d_in, dp), lambda i, ids: (0, 0)),  # VMEM-resident weight
                pl.BlockSpec((1, dp), lambda i, ids: (0, 0)),     # VMEM-resident bias
            ],
            out_specs=pl.BlockSpec((tb, dp), lambda i, ids: (i, 0)),
            scratch_shapes=[
                pltpu.VMEM((tb, d_in), jnp.float32),  # gathered CLS rows
                pltpu.SemaphoreType.DMA,              # shared gather semaphore
            ],
        ),
        compiler_params=pltpu.CompilerParams(
            dimension_semantics=("parallel",),
        ),
    )(ids_p, mask_p, embed_table, w_bf, b_pad)

    # Under jit this slice fuses into the consumer (no standalone HBM pass).
    return out[:B, :d_out]


@functools.partial(jax.jit, static_argnames=("d_out", "block_b"))
def classifier_forward(input_ids, attention_mask, embed_table, w_bf, b_pad, *,
                       d_out, block_b=1024):
    """Synthetic-encoder CLS embedding -> fused Pallas classification head."""
    # TODO(synk): the pretrained RobertaForMaskedLM encoder is not translated;
    # the CLS hidden state is stood in by an embedding-table row (gathered
    # inside the kernel) scaled by the CLS attention-mask value.
    cls_ids = input_ids[:, 0]
    cls_mask = attention_mask[:, 0]
    return classifier_head(cls_ids, cls_mask, embed_table, w_bf, b_pad,
                           d_out=d_out, block_b=block_b)


if __name__ == "__main__":
    # cls_type == 'genre' -> D_in, D_out = 768, 10
    D_in, D_out = 768, 10
    B, S = 2, 8
    VOCAB = 64

    key = jax.random.PRNGKey(0)
    k_ids, k_emb, k_w, k_b = jax.random.split(key, 4)

    input_ids = jax.random.randint(k_ids, (B, S), 0, VOCAB, dtype=jnp.int32)
    attention_mask = jnp.ones((B, S), dtype=jnp.int32)

    # Deterministic parameter init (synthetic, not a checkpoint load).
    embed_table = jax.random.normal(k_emb, (VOCAB, D_in), dtype=jnp.float32) * 0.02
    weight = jax.random.normal(k_w, (D_in, D_out), dtype=jnp.float32) * 0.02
    bias = jax.random.normal(k_b, (D_out,), dtype=jnp.float32) * 0.02

    # Constant prep done once at "model init" (hoisted out of the call path).
    w_bf, b_pad = make_head_params(weight, bias)

    probs = classifier_forward(input_ids, attention_mask, embed_table,
                               w_bf, b_pad, d_out=D_out)
    probs = jax.block_until_ready(probs)

    # Sanity: shape and exact softmax normalization (exact division -> tight).
    assert probs.shape == (B, D_out)
    row_sums = jnp.sum(probs, axis=-1)
    assert bool(jnp.all(jnp.abs(row_sums - 1.0) < 1e-5))

    # Reference check against plain f32 JAX (bf16 MXU operands -> loose-ish tol).
    cls_hidden = embed_table[input_ids[:, 0]] * \
        attention_mask[:, 0].astype(jnp.float32)[:, None]
    ref = jax.nn.softmax(cls_hidden @ weight + bias, axis=-1)
    assert bool(jnp.max(jnp.abs(probs - ref)) < 2e-3)

    print("KERNEL_OK")
</pallas_src>

<mosaic_0001>
module attributes {stable_mosaic.version = 11 : i64} {
  func.func @_fused_head_kernel(%arg0: i32, %arg1: memref<8xi32, #tpu.memory_space<smem>>, %arg2: memref<8x1xf32, #tpu.memory_space<vmem>>, %arg3: memref<64x768xf32, #tpu.memory_space<any>>, %arg4: memref<768x128xbf16, #tpu.memory_space<vmem>>, %arg5: memref<1x128xf32, #tpu.memory_space<vmem>>, %arg6: memref<8x128xf32, #tpu.memory_space<vmem>>, %arg7: memref<8x768xf32, #tpu.memory_space<vmem>>, %arg8: memref<!tpu.dma_semaphore, #tpu.memory_space<semaphore_mem>>) attributes {dimension_semantics = [#tpu.dimension_semantics<parallel>], iteration_bounds = array<i64: 1>, scalar_prefetch = 1 : i64, scratch_operands = 2 : i64, tpu.core_type = #tpu.core_type<tc>, window_params = [{transform_indices = @transform_0, window_bounds = array<i64: 8, 1>}, {}, {pipeline_mode = #tpu.pipeline_mode<synchronous>, transform_indices = @transform_2, window_bounds = array<i64: 768, 128>}, {pipeline_mode = #tpu.pipeline_mode<synchronous>, transform_indices = @transform_3, window_bounds = array<i64: 1, 128>}, {transform_indices = @transform_4, window_bounds = array<i64: 8, 128>}]} {
    %c8_i32 = arith.constant 8 : i32
    %0 = arith.muli %arg0, %c8_i32 : i32
    %c0_i32 = arith.constant 0 : i32
    %c8_i32_0 = arith.constant 8 : i32
    %1 = arith.addi %c0_i32, %c8_i32_0 : i32
    %c1_i32 = arith.constant 1 : i32
    scf.for %arg9 = %c0_i32 to %1 step %c1_i32  : i32 {
      %23 = arith.addi %0, %arg9 : i32
      %24 = arith.index_cast %23 : i32 to index
      %25 = memref.load %arg1[%24] : memref<8xi32, #tpu.memory_space<smem>>
      %c0_i32_17 = arith.constant 0 : i32
      %26 = tpu.memref_slice %arg3[%25, %c0_i32_17] : memref<64x768xf32, #tpu.memory_space<any>> -> memref<1x768xf32, #tpu.memory_space<any>>
      %c0_i32_18 = arith.constant 0 : i32
      %27 = tpu.memref_slice %arg7[%arg9, %c0_i32_18] : memref<8x768xf32, #tpu.memory_space<vmem>> -> memref<1x768xf32, #tpu.memory_space<vmem>>
      tpu.enqueue_dma source(%26 : memref<1x768xf32, #tpu.memory_space<any>>) target(%27 : memref<1x768xf32, #tpu.memory_space<vmem>>) target_semaphore(%arg8 : memref<!tpu.dma_semaphore, #tpu.memory_space<semaphore_mem>>)
    }
    %c8_i32_1 = arith.constant 8 : i32
    %c0_i32_2 = arith.constant 0 : i32
    %c8_i32_3 = arith.constant 8 : i32
    %2 = arith.addi %c0_i32_2, %c8_i32_3 : i32
    %c1_i32_4 = arith.constant 1 : i32
    scf.for %arg9 = %c0_i32_2 to %2 step %c1_i32_4  : i32 {
      %c0_i32_17 = arith.constant 0 : i32
      %c0_i32_18 = arith.constant 0 : i32
      %23 = tpu.memref_slice %arg3[%c0_i32_17, %c0_i32_18] : memref<64x768xf32, #tpu.memory_space<any>> -> memref<1x768xf32, #tpu.memory_space<any>>
      %c0_i32_19 = arith.constant 0 : i32
      %24 = tpu.memref_slice %arg7[%arg9, %c0_i32_19] : memref<8x768xf32, #tpu.memory_space<vmem>> -> memref<1x768xf32, #tpu.memory_space<vmem>>
      tpu.wait_dma2 semaphore(%arg8 : memref<!tpu.dma_semaphore, #tpu.memory_space<semaphore_mem>>) src(%23 : memref<1x768xf32, #tpu.memory_space<any>>) dst(%24 : memref<1x768xf32, #tpu.memory_space<vmem>>)
    }
    %c8_i32_5 = arith.constant 8 : i32
    %c0 = arith.constant 0 : index
    %c0_6 = arith.constant 0 : index
    %3 = vector.load %arg7[%c0, %c0_6] : memref<8x768xf32, #tpu.memory_space<vmem>>, vector<8x768xf32>
    %c0_7 = arith.constant 0 : index
    %c0_8 = arith.constant 0 : index
    %4 = vector.load %arg2[%c0_7, %c0_8] : memref<8x1xf32, #tpu.memory_space<vmem>>, vector<8x1xf32>
    %5 = vector.broadcast %4 : vector<8x1xf32> to vector<8x768xf32>
    %6 = arith.mulf %3, %5 : vector<8x768xf32>
    %7 = arith.truncf %6 : vector<8x768xf32> to vector<8x768xbf16>
    %c0_9 = arith.constant 0 : index
    %c0_10 = arith.constant 0 : index
    %8 = vector.load %arg4[%c0_9, %c0_10] : memref<768x128xbf16, #tpu.memory_space<vmem>>, vector<768x128xbf16>
    %cst = arith.constant dense<0.000000e+00> : vector<8x128xf32>
    %9 = tpu.matmul %7, %8, %cst {dimension_numbers = #tpu.dot_dimension_numbers<[1], [0], [0], [1], [0, 0, 1, 1], [], []>} : vector<8x768xbf16>, vector<768x128xbf16>, vector<8x128xf32> -> vector<8x128xf32>
    %c0_11 = arith.constant 0 : index
    %c0_12 = arith.constant 0 : index
    %10 = vector.load %arg5[%c0_11, %c0_12] : memref<1x128xf32, #tpu.memory_space<vmem>>, vector<1x128xf32>
    %11 = vector.broadcast %10 : vector<1x128xf32> to vector<8x128xf32>
    %12 = arith.addf %9, %11 : vector<8x128xf32>
    %cst_13 = arith.constant dense<0xFF800000> : vector<8xf32>
    %13 = vector.multi_reduction <maximumf>, %12, %cst_13 [1] : vector<8x128xf32> to vector<8xf32>
    %14 = vector.shape_cast %13 : vector<8xf32> to vector<8x1xf32>
    %15 = vector.broadcast %14 : vector<8x1xf32> to vector<8x128xf32>
    %16 = arith.subf %12, %15 : vector<8x128xf32>
    %17 = math.exp %16 : vector<8x128xf32>
    %cst_14 = arith.constant dense<0.000000e+00> : vector<8xf32>
    %18 = vector.multi_reduction <add>, %17, %cst_14 [1] : vector<8x128xf32> to vector<8xf32>
    %19 = vector.shape_cast %18 : vector<8xf32> to vector<8x1xf32>
    %20 = vector.broadcast %19 : vector<8x1xf32> to vector<8x128xf32>
    %21 = arith.divf %17, %20 : vector<8x128xf32>
    %c0_15 = arith.constant 0 : index
    %c0_16 = arith.constant 0 : index
    %22 = vector.load %arg6[%c0_15, %c0_16] : memref<8x128xf32, #tpu.memory_space<vmem>>, vector<8x128xf32>
    tpu.vector_store %arg6[%c0_15, %c0_16], %21 {strides = array<i32>} : memref<8x128xf32, #tpu.memory_space<vmem>>, vector<8x128xf32>,
    return
  }
  func.func @transform_0(%arg0: i32, %arg1: memref<8xi32, #tpu.memory_space<smem>>) -> (i32, i32) {
    %c0_i32 = arith.constant 0 : i32
    %c0_i32_0 = arith.constant 0 : i32
    return %arg0, %c0_i32 : i32, i32
  }
  func.func @transform_2(%arg0: i32, %arg1: memref<8xi32, #tpu.memory_space<smem>>) -> (i32, i32) {
    %c0_i32 = arith.constant 0 : i32
    %c0_i32_0 = arith.constant 0 : i32
    %c0_i32_1 = arith.constant 0 : i32
    return %c0_i32, %c0_i32_0 : i32, i32
  }
  func.func @transform_3(%arg0: i32, %arg1: memref<8xi32, #tpu.memory_space<smem>>) -> (i32, i32) {
    %c0_i32 = arith.constant 0 : i32
    %c0_i32_0 = arith.constant 0 : i32
    %c0_i32_1 = arith.constant 0 : i32
    return %c0_i32, %c0_i32_0 : i32, i32
  }
  func.func @transform_4(%arg0: i32, %arg1: memref<8xi32, #tpu.memory_space<smem>>) -> (i32, i32) {
    %c0_i32 = arith.constant 0 : i32
    %c0_i32_0 = arith.constant 0 : i32
    return %arg0, %c0_i32 : i32, i32
  }
}

</mosaic_0001>

<llo_original>
// kernel: classifier_forward.1
$region0: #{classifier_forward.1}
  #allocation0 [shape = 'u32[]', space=smem, size = 0x4, offset = 0x4, fixed_abs, tag = 'smem constant byte address 0x4 - core index']
  #allocation1 [shape = 'u32[144,128]{1,0:T(1,128)}', space=vmem, size = 0x12000, scoped, tag = 'internal scratch']
  #allocation2 [shape = 'f32[8,768]{1,0:T(8,128)}', space=vmem, size = 0x6000, scoped, tag = 'scratch operand']
  #allocation3 [shape = 's32[1]{0}', space=sflag, size = 0x4, scoped, tag = 'scratch operand']
  #allocation4 [shape = 's32[1]{0}', space=sflag, size = 0x4, scoped, tag = 'scoped memory for classifier_forward.1']
  #allocation5 [shape = 'u8[512]{0}', space=smem, size = 0x200, scoped, tag = 'prefetched SMEM operand 0']
  #allocation8 [shape = 's32[]', space=sflag, size = 0x4, offset = 0, fixed_abs, tag = 'sflag constant byte address 0x0 - dummy sync flag']
  %s0 = inlined_call_operand.vmem [shape: s32[8], index: 0, kind: input, shape index: {}]
  %s1 = inlined_call_operand.vmem [shape: f32[8,1], index: 1, kind: input, shape index: {}]
  %s2 = inlined_call_operand.hbm [shape: f32[64,768], index: 2, kind: input, shape index: {}]
  %s3 = inlined_call_operand.hbm [shape: bf16[768,128], index: 3, kind: input, shape index: {}]
  %s4 = inlined_call_operand.vmem [shape: f32[1,128], index: 4, kind: input, shape index: {}]
  %s5 = inlined_call_operand.vmem [shape: f32[8,128], index: 5, kind: output, shape index: {}]
  %s6 = sld [smem:[#allocation0]]
  $region40: #{classifier_forward.1} parent=0
    _
  %s8 = ssub.s32 1, %s6
  %s9 = scalar_select 0, %s8, %s6
  %s10 = sshll.u32 %s0, 4
  %s11 = int_to_ptr.vmem [resolvable:$true] %s10
  %13 = dma.vmem_to_smem %s11, 16, [#allocation5], [#allocation4]
  %14 = dma.done [#allocation4], 16
  %15 = sfence
  $region1: #{classifier_forward.1} parent=0
    #allocation6 [shape = 'u8[196608]{0}', space=vmem, size = 0x30000, scoped, tag = 'input window, operand 3, single buffered']
    #allocation7 [shape = 's32[1]{0}', space=sflag, size = 0x4, scoped, tag = 'scoped memory for classifier_forward.1']
    %16 = vsyncpa [#allocation7], 0
    // Predicated region
    $region2: #{classifier_forward.1} parent=1 // pred_check
      _
    $region3: #{classifier_forward.1} parent=1 // pred_check_branch
      %18 = sbr.rel (0) target = $region5
    $region4: #{classifier_forward.1} parent=1 // pred_region
      _
    $region5: #{classifier_forward.1} parent=1 // pred_fallthru
      _
    // Predicated region
    $region6: #{classifier_forward.1} parent=1 // pred_check
      _
    $region7: #{classifier_forward.1} parent=1 // pred_check_branch
      %20 = sbr.rel (0) target = $region9
    $region8: #{classifier_forward.1} parent=1 // pred_region
      %s22 = ssub.s32 6144, 6144
      %23 = vsyncadd [#allocation7], %s22
      %s24 = sshll.u32 [#allocation6], 4
      %s25 = int_to_ptr.vmem [resolvable:$true] %s24
      %30 = dma.hbm_to_vmem [thread:$0]  %s3, 6144, %s25, [#allocation7], 64, 64, 4
    $region9: #{classifier_forward.1} parent=1 // pred_fallthru
      _
    // Predicated region
    $region10: #{classifier_forward.1} parent=1 // pred_check
      _
    $region11: #{classifier_forward.1} parent=1 // pred_check_branch
      %32 = sbr.rel (0) target = $region13
    $region12: #{classifier_forward.1} parent=1 // pred_region
      _
    $region13: #{classifier_forward.1} parent=1 // pred_fallthru
      _
    // Predicated region
    $region14: #{classifier_forward.1} parent=1 // pred_check
      _
    $region15: #{classifier_forward.1} parent=1 // pred_check_branch
      %34 = sbr.rel (0) target = $region17
    $region16: #{classifier_forward.1} parent=1 // pred_region
      %35 = dma.done [#allocation7], 6144
    $region17: #{classifier_forward.1} parent=1 // pred_fallthru
      _
    %s37 = smul.u32 0, 8
    loop: start=0, step=1, limit=8
    $region18: #{classifier_forward.1} parent=1 // loop_pre_header
      _
    $region19: #{classifier_forward.1} parent=1 // loop_header
      %s39 = sphi 0, %s43
      %p40 = scmp.ge.s32.totalorder %s39, 8
    $region20: #{classifier_forward.1} parent=1 // loop_header_branch
      %42 = sbr.rel (%p40) target = $region24
    $region21: #{classifier_forward.1} parent=1 // loop_body
      %s44 = sadd.s32 %s37, %s39
      %s45 = sld [smem:[#allocation5 + %s44]]
      %s46 = sshrl.u32 %s45, 3
      %s47 = sand.u32 %s45, 7
      %s48 = smul.u32 %s46, 48
      %s49 = sadd.s32 %s47, %s48
      %s50 = smul.addr %s49, 16
      %s51 = scalar_lea.hbm %s2, %s50
      %s52 = sshrl.u32 %s39, 3
      %s53 = sand.u32 %s39, 7
      %s54 = smul.u32 %s52, 48
      %s55 = sadd.s32 %s53, %s54
      %s56 = scalar_lea.vmem [#allocation2], %s55
      %s58 = sshll.u32 %s56, 4
      %s59 = int_to_ptr.vmem [resolvable:$true] %s58
      %61 = dma.hbm_to_vmem [thread:$0]  %s51, 96, %s59, [#allocation3], 128, 128, 1
    $region22: #{classifier_forward.1} parent=1 // loop_footer
      %s43 = sadd.s32 1, %s39
    $region23: #{classifier_forward.1} parent=1 // loop_footer_branch
      %38 = sbr.rel target = $region19
    $region24: #{classifier_forward.1} parent=1 // loop_exit
      _
    loop: start=0, step=1, limit=8
    $region25: #{classifier_forward.1} parent=1 // loop_pre_header
      _
    $region26: #{classifier_forward.1} parent=1 // loop_header
      %s63 = sphi 0, %s67
      %p64 = scmp.ge.s32.totalorder %s63, 8
    $region27: #{classifier_forward.1} parent=1 // loop_header_branch
      %66 = sbr.rel (%p64) target = $region31
    $region28: #{classifier_forward.1} parent=1 // loop_body
      %s68 = smul.u32 1, 6
      %s69 = sshll.u32 %s68, 4
      %70 = dma.done [#allocation3], %s69
    $region29: #{classifier_forward.1} parent=1 // loop_footer
      %s67 = sadd.s32 1, %s63
    $region30: #{classifier_forward.1} parent=1 // loop_footer_branch
      %62 = sbr.rel target = $region26
    $region31: #{classifier_forward.1} parent=1 // loop_exit
      _
    %v71 = vld [vmem:[#allocation2] sm:$0xff]
    %v72 = vld [vmem:[#allocation2 + $0x8] sm:$0xff]
    %v73 = vld [vmem:[#allocation2 + $0x10] sm:$0xff]
    %v74 = vld [vmem:[#allocation2 + $0x18] sm:$0xff]
    %v75 = vld [vmem:[#allocation2 + $0x20] sm:$0xff]
    %v76 = vld [vmem:[#allocation2 + $0x28] sm:$0xff]
    %v77 = vld [vmem:[%s1] sm:$0xff]
    %79 = vset.pattern.permute.xlu0 0
    %80 = vperm.xlu0 %79, %v77
    %v81 = vpop.permute.xlu0 %80
    %v83 = vmul.f32 %v71, %v81
    %v84 = vmul.f32 %v72, %v81
    %v85 = vmul.f32 %v73, %v81
    %v86 = vmul.f32 %v74, %v81
    %v87 = vmul.f32 %v75, %v81
    %v88 = vmul.f32 %v76, %v81
    %v89 = vpack.c.bf16 %v83, %v83
    %v90 = vpack.c.bf16 %v84, %v84
    %v91 = vpack.c.bf16 %v85, %v85
    %v92 = vpack.c.bf16 %v86, %v86
    %v93 = vpack.c.bf16 %v87, %v87
    %v94 = vpack.c.bf16 %v88, %v88
    %v95 = vld [vmem:[#allocation6] sm:$0xf]
    %v96 = vld [vmem:[#allocation6 + $0x4] sm:$0xf]
    %v97 = vld [vmem:[#allocation6 + $0x8] sm:$0xf]
    %v98 = vld [vmem:[#allocation6 + $0xc] sm:$0xf]
    %v99 = vld [vmem:[#allocation6 + $0x10] sm:$0xf]
    %v100 = vld [vmem:[#allocation6 + $0x14] sm:$0xf]
    %v101 = vld [vmem:[#allocation6 + $0x18] sm:$0xf]
    %v102 = vld [vmem:[#allocation6 + $0x1c] sm:$0xf]
    %v103 = vld [vmem:[#allocation6 + $0x20] sm:$0xf]
    %v104 = vld [vmem:[#allocation6 + $0x24] sm:$0xf]
    %v105 = vld [vmem:[#allocation6 + $0x28] sm:$0xf]
    %v106 = vld [vmem:[#allocation6 + $0x2c] sm:$0xf]
    %v107 = vld [vmem:[#allocation6 + $0x30] sm:$0xf]
    %v108 = vld [vmem:[#allocation6 + $0x34] sm:$0xf]
    %v109 = vld [vmem:[#allocation6 + $0x38] sm:$0xf]
    %v110 = vld [vmem:[#allocation6 + $0x3c] sm:$0xf]
    %v111 = vld [vmem:[#allocation6 + $0x40] sm:$0xf]
    %v112 = vld [vmem:[#allocation6 + $0x44] sm:$0xf]
    %v113 = vld [vmem:[#allocation6 + $0x48] sm:$0xf]
    %v114 = vld [vmem:[#allocation6 + $0x4c] sm:$0xf]
    %v115 = vld [vmem:[#allocation6 + $0x50] sm:$0xf]
    %v116 = vld [vmem:[#allocation6 + $0x54] sm:$0xf]
    %v117 = vld [vmem:[#allocation6 + $0x58] sm:$0xf]
    %v118 = vld [vmem:[#allocation6 + $0x5c] sm:$0xf]
    %v119 = vld [vmem:[#allocation6 + $0x60] sm:$0xf]
    %v120 = vld [vmem:[#allocation6 + $0x64] sm:$0xf]
    %v121 = vld [vmem:[#allocation6 + $0x68] sm:$0xf]
    %v122 = vld [vmem:[#allocation6 + $0x6c] sm:$0xf]
    %v123 = vld [vmem:[#allocation6 + $0x70] sm:$0xf]
    %v124 = vld [vmem:[#allocation6 + $0x74] sm:$0xf]
    %v125 = vld [vmem:[#allocation6 + $0x78] sm:$0xf]
    %v126 = vld [vmem:[#allocation6 + $0x7c] sm:$0xf]
    %v127 = vld [vmem:[#allocation6 + $0x80] sm:$0xf]
    %v128 = vld [vmem:[#allocation6 + $0x84] sm:$0xf]
    %v129 = vld [vmem:[#allocation6 + $0x88] sm:$0xf]
    %v130 = vld [vmem:[#allocation6 + $0x8c] sm:$0xf]
    %v131 = vld [vmem:[#allocation6 + $0x90] sm:$0xf]
    %v132 = vld [vmem:[#allocation6 + $0x94] sm:$0xf]
    %v133 = vld [vmem:[#allocation6 + $0x98] sm:$0xf]
    %v134 = vld [vmem:[#allocation6 + $0x9c] sm:$0xf]
    %v135 = vld [vmem:[#allocation6 + $0xa0] sm:$0xf]
    %v136 = vld [vmem:[#allocation6 + $0xa4] sm:$0xf]
    %v137 = vld [vmem:[#allocation6 + $0xa8] sm:$0xf]
    %v138 = vld [vmem:[#allocation6 + $0xac] sm:$0xf]
    %v139 = vld [vmem:[#allocation6 + $0xb0] sm:$0xf]
    %v140 = vld [vmem:[#allocation6 + $0xb4] sm:$0xf]
    %v141 = vld [vmem:[#allocation6 + $0xb8] sm:$0xf]
    %v142 = vld [vmem:[#allocation6 + $0xbc] sm:$0xf]
    %v143 = vld [vmem:[#allocation6 + $0xc0] sm:$0xf]
    %v144 = vld [vmem:[#allocation6 + $0xc4] sm:$0xf]
    %v145 = vld [vmem:[#allocation6 + $0xc8] sm:$0xf]
    %v146 = vld [vmem:[#allocation6 + $0xcc] sm:$0xf]
    %v147 = vld [vmem:[#allocation6 + $0xd0] sm:$0xf]
    %v148 = vld [vmem:[#allocation6 + $0xd4] sm:$0xf]
    %v149 = vld [vmem:[#allocation6 + $0xd8] sm:$0xf]
    %v150 = vld [vmem:[#allocation6 + $0xdc] sm:$0xf]
    %v151 = vld [vmem:[#allocation6 + $0xe0] sm:$0xf]
    %v152 = vld [vmem:[#allocation6 + $0xe4] sm:$0xf]
    %v153 = vld [vmem:[#allocation6 + $0xe8] sm:$0xf]
    %v154 = vld [vmem:[#allocation6 + $0xec] sm:$0xf]
    %v155 = vld [vmem:[#allocation6 + $0xf0] sm:$0xf]
    %v156 = vld [vmem:[#allocation6 + $0xf4] sm:$0xf]
    %v157 = vld [vmem:[#allocation6 + $0xf8] sm:$0xf]
    %v158 = vld [vmem:[#allocation6 + $0xfc] sm:$0xf]
    %v159 = vld [vmem:[#allocation6 + $0x100] sm:$0xf]
    %v160 = vld [vmem:[#allocation6 + $0x104] sm:$0xf]
    %v161 = vld [vmem:[#allocation6 + $0x108] sm:$0xf]
    %v162 = vld [vmem:[#allocation6 + $0x10c] sm:$0xf]
    %v163 = vld [vmem:[#allocation6 + $0x110] sm:$0xf]
    %v164 = vld [vmem:[#allocation6 + $0x114] sm:$0xf]
    %v165 = vld [vmem:[#allocation6 + $0x118] sm:$0xf]
    %v166 = vld [vmem:[#allocation6 + $0x11c] sm:$0xf]
    %v167 = vld [vmem:[#allocation6 + $0x120] sm:$0xf]
    %v168 = vld [vmem:[#allocation6 + $0x124] sm:$0xf]
    %v169 = vld [vmem:[#allocation6 + $0x128] sm:$0xf]
    %v170 = vld [vmem:[#allocation6 + $0x12c] sm:$0xf]
    %v171 = vld [vmem:[#allocation6 + $0x130] sm:$0xf]
    %v172 = vld [vmem:[#allocation6 + $0x134] sm:$0xf]
    %v173 = vld [vmem:[#allocation6 + $0x138] sm:$0xf]
    %v174 = vld [vmem:[#allocation6 + $0x13c] sm:$0xf]
    %v175 = vld [vmem:[#allocation6 + $0x140] sm:$0xf]
    %v176 = vld [vmem:[#allocation6 + $0x144] sm:$0xf]
    %v177 = vld [vmem:[#allocation6 + $0x148] sm:$0xf]
    %v178 = vld [vmem:[#allocation6 + $0x14c] sm:$0xf]
    %v179 = vld [vmem:[#allocation6 + $0x150] sm:$0xf]
    %v180 = vld [vmem:[#allocation6 + $0x154] sm:$0xf]
    %v181 = vld [vmem:[#allocation6 + $0x158] sm:$0xf]
    %v182 = vld [vmem:[#allocation6 + $0x15c] sm:$0xf]
    %v183 = vld [vmem:[#allocation6 + $0x160] sm:$0xf]
    %v184 = vld [vmem:[#allocation6 + $0x164] sm:$0xf]
    %v185 = vld [vmem:[#allocation6 + $0x168] sm:$0xf]
    %v186 = vld [vmem:[#allocation6 + $0x16c] sm:$0xf]
    %v187 = vld [vmem:[#allocation6 + $0x170] sm:$0xf]
    %v188 = vld [vmem:[#allocation6 + $0x174] sm:$0xf]
    %v189 = vld [vmem:[#allocation6 + $0x178] sm:$0xf]
    %v190 = vld [vmem:[#allocation6 + $0x17c] sm:$0xf]
    %v191 = vld [vmem:[%s4] sm:$0x1]
    %v193 = vlaneseq
    %v194 = vshrl.u32 %v193, 7
    %v195 = vsub.s32 0, %v194
    %v196 = vrot.slane %v191, %v195
    %v294 = vunpack.c.l.b16 %v95
    %v295 = vunpack.c.l.b16 %v96
    %v296 = vunpack.c.l.b16 %v97
    %v297 = vunpack.c.l.b16 %v98
    %v298 = vunpack.c.l.b16 %v99
    %v299 = vunpack.c.l.b16 %v100
    %v300 = vunpack.c.l.b16 %v101
    %v301 = vunpack.c.l.b16 %v102
    %v302 = vunpack.c.l.b16 %v103
    %v303 = vunpack.c.l.b16 %v104
    %v304 = vunpack.c.l.b16 %v105
    %v305 = vunpack.c.l.b16 %v106
    %v306 = vunpack.c.l.b16 %v107
    %v307 = vunpack.c.l.b16 %v108
    %v308 = vunpack.c.l.b16 %v109
    %v309 = vunpack.c.l.b16 %v110
    %v310 = vunpack.c.l.b16 %v111
    %v311 = vunpack.c.l.b16 %v112
    %v312 = vunpack.c.l.b16 %v113
    %v313 = vunpack.c.l.b16 %v114
    %v314 = vunpack.c.l.b16 %v115
    %v315 = vunpack.c.l.b16 %v116
    %v316 = vunpack.c.l.b16 %v117
    %v317 = vunpack.c.l.b16 %v118
    %v318 = vunpack.c.l.b16 %v119
    %v319 = vunpack.c.l.b16 %v120
    %v320 = vunpack.c.l.b16 %v121
    %v321 = vunpack.c.l.b16 %v122
    %v322 = vunpack.c.l.b16 %v123
    %v323 = vunpack.c.l.b16 %v124
    %v324 = vunpack.c.l.b16 %v125
    %v325 = vunpack.c.l.b16 %v126
    %v326 = vunpack.c.l.b16 %v127
    %v327 = vunpack.c.l.b16 %v128
    %v328 = vunpack.c.l.b16 %v129
    %v329 = vunpack.c.l.b16 %v130
    %v330 = vunpack.c.l.b16 %v131
    %v331 = vunpack.c.l.b16 %v132
    %v332 = vunpack.c.l.b16 %v133
    %v333 = vunpack.c.l.b16 %v134
    %v334 = vunpack.c.l.b16 %v135
    %v335 = vunpack.c.l.b16 %v136
    %v336 = vunpack.c.l.b16 %v137
    %v337 = vunpack.c.l.b16 %v138
    %v338 = vunpack.c.l.b16 %v139
    %v339 = vunpack.c.l.b16 %v140
    %v340 = vunpack.c.l.b16 %v141
    %v341 = vunpack.c.l.b16 %v142
    %v342 = vunpack.c.l.b16 %v143
    %v343 = vunpack.c.l.b16 %v144
    %v344 = vunpack.c.l.b16 %v145
    %v345 = vunpack.c.l.b16 %v146
    %v346 = vunpack.c.l.b16 %v147
    %v347 = vunpack.c.l.b16 %v148
    %v348 = vunpack.c.l.b16 %v149
    %v349 = vunpack.c.l.b16 %v150
    %v350 = vunpack.c.l.b16 %v151
    %v351 = vunpack.c.l.b16 %v152
    %v352 = vunpack.c.l.b16 %v153
    %v353 = vunpack.c.l.b16 %v154
    %v354 = vunpack.c.l.b16 %v155
    %v355 = vunpack.c.l.b16 %v156
    %v356 = vunpack.c.l.b16 %v157
    %v357 = vunpack.c.l.b16 %v158
    %v358 = vunpack.c.l.b16 %v159
    %v359 = vunpack.c.l.b16 %v160
    %v360 = vunpack.c.l.b16 %v161
    %v361 = vunpack.c.l.b16 %v162
    %v362 = vunpack.c.l.b16 %v163
    %v363 = vunpack.c.l.b16 %v164
    %v364 = vunpack.c.l.b16 %v165
    %v365 = vunpack.c.l.b16 %v166
    %v366 = vunpack.c.l.b16 %v167
    %v367 = vunpack.c.l.b16 %v168
    %v368 = vunpack.c.l.b16 %v169
    %v369 = vunpack.c.l.b16 %v170
    %v370 = vunpack.c.l.b16 %v171
    %v371 = vunpack.c.l.b16 %v172
    %v372 = vunpack.c.l.b16 %v173
    %v373 = vunpack.c.l.b16 %v174
    %v374 = vunpack.c.l.b16 %v175
    %v375 = vunpack.c.l.b16 %v176
    %v376 = vunpack.c.l.b16 %v177
    %v377 = vunpack.c.l.b16 %v178
    %v378 = vunpack.c.l.b16 %v179
    %v379 = vunpack.c.l.b16 %v180
    %v380 = vunpack.c.l.b16 %v181
    %v381 = vunpack.c.l.b16 %v182
    %v382 = vunpack.c.l.b16 %v183
    %v383 = vunpack.c.l.b16 %v184
    %v384 = vunpack.c.l.b16 %v185
    %v385 = vunpack.c.l.b16 %v186
    %v386 = vunpack.c.l.b16 %v187
    %v387 = vunpack.c.l.b16 %v188
    %v388 = vunpack.c.l.b16 %v189
    %v389 = vunpack.c.l.b16 %v190
    %v390 = vpack.c.b16 %v295, %v294
    %v391 = vpack.c.b16 %v297, %v296
    %v392 = vpack.c.b16 %v299, %v298
    %v393 = vpack.c.b16 %v301, %v300
    %v394 = vpack.c.b16 %v303, %v302
    %v395 = vpack.c.b16 %v305, %v304
    %v396 = vpack.c.b16 %v307, %v306
    %v397 = vpack.c.b16 %v309, %v308
    %v398 = vpack.c.b16 %v311, %v310
    %v399 = vpack.c.b16 %v313, %v312
    %v400 = vpack.c.b16 %v315, %v314
    %v401 = vpack.c.b16 %v317, %v316
    %v402 = vpack.c.b16 %v319, %v318
    %v403 = vpack.c.b16 %v321, %v320
    %v404 = vpack.c.b16 %v323, %v322
    %v405 = vpack.c.b16 %v325, %v324
    %v406 = vpack.c.b16 %v327, %v326
    %v407 = vpack.c.b16 %v329, %v328
    %v408 = vpack.c.b16 %v331, %v330
    %v409 = vpack.c.b16 %v333, %v332
    %v410 = vpack.c.b16 %v335, %v334
    %v411 = vpack.c.b16 %v337, %v336
    %v412 = vpack.c.b16 %v339, %v338
    %v413 = vpack.c.b16 %v341, %v340
    %v414 = vpack.c.b16 %v343, %v342
    %v415 = vpack.c.b16 %v345, %v344
    %v416 = vpack.c.b16 %v347, %v346
    %v417 = vpack.c.b16 %v349, %v348
    %v418 = vpack.c.b16 %v351, %v350
    %v419 = vpack.c.b16 %v353, %v352
    %v420 = vpack.c.b16 %v355, %v354
    %v421 = vpack.c.b16 %v357, %v356
    %v422 = vpack.c.b16 %v359, %v358
    %v423 = vpack.c.b16 %v361, %v360
    %v424 = vpack.c.b16 %v363, %v362
    %v425 = vpack.c.b16 %v365, %v364
    %v426 = vpack.c.b16 %v367, %v366
    %v427 = vpack.c.b16 %v369, %v368
    %v428 = vpack.c.b16 %v371, %v370
    %v429 = vpack.c.b16 %v373, %v372
    %v430 = vpack.c.b16 %v375, %v374
    %v431 = vpack.c.b16 %v377, %v376
    %v432 = vpack.c.b16 %v379, %v378
    %v433 = vpack.c.b16 %v381, %v380
    %v434 = vpack.c.b16 %v383, %v382
    %v435 = vpack.c.b16 %v385, %v384
    %v436 = vpack.c.b16 %v387, %v386
    %v437 = vpack.c.b16 %v389, %v388
    %486 = vmatprep.subr.bf16.mxu0 0
    %487 = vmatpush1.bf16.msra.mxu0 %v390
    %488 = vmatprep.subr.bf16.mxu0 0
    %489 = vmatpush1.bf16.msra.mxu0 %v391
    %490 = vmatprep.subr.bf16.mxu0 0
    %491 = vmatpush1.bf16.msra.mxu0 %v392
    %492 = vmatprep.subr.bf16.mxu0 0
    %493 = vmatpush1.bf16.msra.mxu0 %v393
    %494 = vmatprep.subr.bf16.mxu0 0
    %495 = vmatpush1.bf16.msra.mxu0 %v394
    %496 = vmatprep.subr.bf16.mxu0 0
    %497 = vmatpush1.bf16.msra.mxu0 %v395
    %498 = vmatprep.subr.bf16.mxu0 0
    %499 = vmatpush1.bf16.msra.mxu0 %v396
    %500 = vmatprep.subr.bf16.mxu0 0
    %501 = vmatpush1.bf16.msra.mxu0 %v397
    %502 = vmatprep.subr.bf16.mxu0 0
    %503 = vmatpush1.bf16.msra.mxu0 %v398
    %504 = vmatprep.subr.bf16.mxu0 0
    %505 = vmatpush1.bf16.msra.mxu0 %v399
    %506 = vmatprep.subr.bf16.mxu0 0
    %507 = vmatpush1.bf16.msra.mxu0 %v400
    %508 = vmatprep.subr.bf16.mxu0 0
    %509 = vmatpush1.bf16.msra.mxu0 %v401
    %510 = vmatprep.subr.bf16.mxu0 0
    %511 = vmatpush1.bf16.msra.mxu0 %v402
    %512 = vmatprep.subr.bf16.mxu0 0
    %513 = vmatpush1.bf16.msra.mxu0 %v403
    %514 = vmatprep.subr.bf16.mxu0 0
    %515 = vmatpush1.bf16.msra.mxu0 %v404
    %516 = vmatprep.subr.bf16.mxu0 0
    %517 = vmatpush1.bf16.msra.mxu0 %v405
    %518 = vmatprep.mubr.bf16.mxu0 %v90
    %519 = vmatmul.mubr.bf16.gmra.mrb[0].mxu0 %v89
    %v520 = vpop.f32.mrb[0].mxu0
    %v521 = vadd.f32 %v196, %v520
    %v522 = vpop.f32.mrb[0].mxu0
    %v523 = vpop.f32.mrb[0].mxu0
    %v524 = vpop.f32.mrb[0].mxu0
    %525 = vdwg.mxu0
    %526 = vmatprep.subr.bf16.mxu0 0
    %527 = vmatpush1.bf16.msra.mxu0 %v406
    %528 = vmatprep.subr.bf16.mxu0 0
    %529 = vmatpush1.bf16.msra.mxu0 %v407
    %530 = vmatprep.subr.bf16.mxu0 0
    %531 = vmatpush1.bf16.msra.mxu0 %v408
    %532 = vmatprep.subr.bf16.mxu0 0
    %533 = vmatpush1.bf16.msra.mxu0 %v409
    %534 = vmatprep.subr.bf16.mxu0 0
    %535 = vmatpush1.bf16.msra.mxu0 %v410
    %536 = vmatprep.subr.bf16.mxu0 0
    %537 = vmatpush1.bf16.msra.mxu0 %v411
    %538 = vmatprep.subr.bf16.mxu0 0
    %539 = vmatpush1.bf16.msra.mxu0 %v412
    %540 = vmatprep.subr.bf16.mxu0 0
    %541 = vmatpush1.bf16.msra.mxu0 %v413
    %542 = vmatprep.subr.bf16.mxu0 0
    %543 = vmatpush1.bf16.msra.mxu0 %v414
    %544 = vmatprep.subr.bf16.mxu0 0
    %545 = vmatpush1.bf16.msra.mxu0 %v415
    %546 = vmatprep.subr.bf16.mxu0 0
    %547 = vmatpush1.bf16.msra.mxu0 %v416
    %548 = vmatprep.subr.bf16.mxu0 0
    %549 = vmatpush1.bf16.msra.mxu0 %v417
    %550 = vmatprep.subr.bf16.mxu0 0
    %551 = vmatpush1.bf16.msra.mxu0 %v418
    %552 = vmatprep.subr.bf16.mxu0 0
    %553 = vmatpush1.bf16.msra.mxu0 %v419
    %554 = vmatprep.subr.bf16.mxu0 0
    %555 = vmatpush1.bf16.msra.mxu0 %v420
    %556 = vmatprep.subr.bf16.mxu0 0
    %557 = vmatpush1.bf16.msra.mxu0 %v421
    %558 = vmatprep.mubr.bf16.mxu0 %v92
    %559 = vmatmul.mubr.bf16.gmra.mrb[0].mxu0 %v91
    %v560 = vpop.f32.mrb[0].mxu0
    %v561 = vadd.f32 %v521, %v560
    %v562 = vpop.f32.mrb[0].mxu0
    %v563 = vpop.f32.mrb[0].mxu0
    %v564 = vpop.f32.mrb[0].mxu0
    %565 = vdwg.mxu0
    %566 = vmatprep.subr.bf16.mxu0 0
    %567 = vmatpush1.bf16.msra.mxu0 %v422
    %568 = vmatprep.subr.bf16.mxu0 0
    %569 = vmatpush1.bf16.msra.mxu0 %v423
    %570 = vmatprep.subr.bf16.mxu0 0
    %571 = vmatpush1.bf16.msra.mxu0 %v424
    %572 = vmatprep.subr.bf16.mxu0 0
    %573 = vmatpush1.bf16.msra.mxu0 %v425
    %574 = vmatprep.subr.bf16.mxu0 0
    %575 = vmatpush1.bf16.msra.mxu0 %v426
    %576 = vmatprep.subr.bf16.mxu0 0
    %577 = vmatpush1.bf16.msra.mxu0 %v427
    %578 = vmatprep.subr.bf16.mxu0 0
    %579 = vmatpush1.bf16.msra.mxu0 %v428
    %580 = vmatprep.subr.bf16.mxu0 0
    %581 = vmatpush1.bf16.msra.mxu0 %v429
    %582 = vmatprep.subr.bf16.mxu0 0
    %583 = vmatpush1.bf16.msra.mxu0 %v430
    %584 = vmatprep.subr.bf16.mxu0 0
    %585 = vmatpush1.bf16.msra.mxu0 %v431
    %586 = vmatprep.subr.bf16.mxu0 0
    %587 = vmatpush1.bf16.msra.mxu0 %v432
    %588 = vmatprep.subr.bf16.mxu0 0
    %589 = vmatpush1.bf16.msra.mxu0 %v433
    %590 = vmatprep.subr.bf16.mxu0 0
    %591 = vmatpush1.bf16.msra.mxu0 %v434
    %592 = vmatprep.subr.bf16.mxu0 0
    %593 = vmatpush1.bf16.msra.mxu0 %v435
    %594 = vmatprep.subr.bf16.mxu0 0
    %595 = vmatpush1.bf16.msra.mxu0 %v436
    %596 = vmatprep.subr.bf16.mxu0 0
    %597 = vmatpush1.bf16.msra.mxu0 %v437
    %598 = vmatprep.mubr.bf16.mxu0 %v94
    %599 = vmatmul.mubr.bf16.gmra.mrb[0].mxu0 %v93
    %v600 = vpop.f32.mrb[0].mxu0
    %v601 = vadd.f32 %v561, %v600
    %v602 = vpop.f32.mrb[0].mxu0
    %v603 = vpop.f32.mrb[0].mxu0
    %v604 = vpop.f32.mrb[0].mxu0
    %605 = vdwg.mxu0
    %606 = vmax.xlane.f32.xlu0 %v601
    %v607 = vpop.xlane.xlu0 %606
    %v608 = vsub.f32 %v601, %v607
    %v609 = vmul.f32 %v608, 1.442695
    %v610 = vpow.pop %v609
    %611 = vadd.xlane.f32.xlu0 %v610
    %v612 = vpop.xlane.xlu0 %611
    %v613 = vrcp.pop %v612
    %v614 = vmul.f32 %v610, %v613
    %615 = vst [vmem:[%s5] sm:$0xff] %v614
    // Predicated region
    $region32: #{classifier_forward.1} parent=1 // pred_check
      _
    $region33: #{classifier_forward.1} parent=1 // pred_check_branch
      %617 = sbr.rel (0) target = $region35
    $region34: #{classifier_forward.1} parent=1 // pred_region
      _
    $region35: #{classifier_forward.1} parent=1 // pred_fallthru
      _
    // Predicated region
    $region36: #{classifier_forward.1} parent=1 // pred_check
      _
    $region37: #{classifier_forward.1} parent=1 // pred_check_branch
      %619 = sbr.rel (0) target = $region39
    $region38: #{classifier_forward.1} parent=1 // pred_region
      _
    $region39: #{classifier_forward.1} parent=1 // pred_fallthru
      _
    %620 = vsyncpa [#allocation7], 1
  %621 = vsyncmov [#allocation3]
  %s622 = vpop.sfrf %621
  %p623 = scmp.eq.s32.totalorder %s622, 0
  %p624 = pneg %p623
  %626 = shalt.err (%p624)

</llo_original>
